<compile_context>
chip_gen: v7x
topology: tpu7x:2x2x1
jax: 0.10.0
libtpu: 0.0.40
codegen_flags: <defaults>
</compile_context>

<pallas_src>
import functools

import jax
import jax.numpy as jnp
from jax.experimental import pallas as pl
from jax.experimental.pallas import tpu as pltpu


def _mse_ce_scaled_avg_kernel(preds_ref, target_ref, out_ref, *,
                              n_classes: int, batch: int):
    preds = preds_ref[...]                                    # [B, NC] f32

    # middles = torch.arange(0, 100, step) + step  (step = 100 / n_classes)
    step = 100.0 / n_classes
    idx = jax.lax.broadcasted_iota(jnp.int32, (1, n_classes), 1)
    middles = idx.astype(jnp.float32) * step + step           # [1, NC]

    # Numerically-stable softmax expectation, fused:
    #   E[x] = sum(exp(s) * middles) / sum(exp(s))
    m = jnp.max(preds, axis=-1, keepdims=True)                # XLU lane-reduce
    e = jnp.exp(preds - m)                                    # EUP
    num = jnp.sum(e * middles, axis=-1, keepdims=True)        # [B, 1]
    den = jnp.sum(e, axis=-1, keepdims=True)                  # [B, 1]
    expected = num * pl.reciprocal(den, approx=True)          # EUP reciprocal

    # MSE (reduction='mean') against target.
    diff = expected - target_ref[...]                         # [B, 1]
    out_ref[...] = jnp.sum(diff * diff, keepdims=True) * (1.0 / batch)  # [1, 1]


@functools.partial(jax.jit, static_argnames=("n_classes",))
def mse_ce_scaled_averaging(preds, target, *, n_classes):
    """preds: [B, n_classes], target: [B] -> scalar loss (like F.mse_loss)."""
    preds = preds.astype(jnp.float32)
    batch = preds.shape[0]
    assert preds.shape[1] == n_classes
    target = target.astype(jnp.float32).reshape(batch, 1)     # [B, 1]

    kernel = functools.partial(
        _mse_ce_scaled_avg_kernel, n_classes=n_classes, batch=batch)

    vmem = pl.BlockSpec(memory_space=pltpu.MemorySpace.VMEM)
    out = pl.pallas_call(
        kernel,
        out_shape=jax.ShapeDtypeStruct((1, 1), jnp.float32),
        in_specs=[vmem, vmem],
        out_specs=vmem,
    )(preds, target)
    return out[0, 0]                                          # 0-d scalar


if __name__ == "__main__":
    N_CLASSES = 20
    BATCH = 8

    key = jax.random.PRNGKey(0)
    k1, k2 = jax.random.split(key)
    preds = jax.random.normal(k1, (BATCH, N_CLASSES), jnp.float32)
    target = jax.random.uniform(k2, (BATCH,), jnp.float32) * 100.0

    loss = mse_ce_scaled_averaging(preds, target, n_classes=N_CLASSES)
    jax.block_until_ready(loss)

    # Pure-JAX reference (mirrors the PyTorch module exactly).
    step = 100.0 / N_CLASSES
    middles = jnp.arange(0, 100, step, dtype=jnp.float32) + step
    expected = jnp.sum(jax.nn.softmax(preds, axis=1) * middles, axis=1)
    ref = jnp.mean((expected - target) ** 2)

    assert loss.shape == (), loss.shape
    assert bool(jnp.isfinite(loss))
    # approx reciprocal in the softmax denom -> loose-but-tight tolerance
    assert jnp.allclose(loss, ref, rtol=5e-3, atol=1e-3), (float(loss), float(ref))
    print("KERNEL_OK")
</pallas_src>

<mosaic_0001>
module attributes {stable_mosaic.version = 11 : i64} {
  func.func @_mse_ce_scaled_avg_kernel(%arg0: memref<8x20xf32, #tpu.memory_space<vmem>>, %arg1: memref<8x1xf32, #tpu.memory_space<vmem>>, %arg2: memref<1x1xf32, #tpu.memory_space<vmem>>) attributes {dimension_semantics = [], scalar_prefetch = 0 : i64, scratch_operands = 0 : i64, tpu.core_type = #tpu.core_type<tc>} {
    %c0 = arith.constant 0 : index
    %c0_0 = arith.constant 0 : index
    %0 = vector.load %arg0[%c0, %c0_0] : memref<8x20xf32, #tpu.memory_space<vmem>>, vector<8x20xf32>
    %1 = tpu.iota {dimensions = array<i32: 1>} : vector<1x20xi32>
    %2 = arith.sitofp %1 : vector<1x20xi32> to vector<1x20xf32>
    %cst = arith.constant 5.000000e+00 : f32
    %3 = vector.broadcast %cst : f32 to vector<1x20xf32>
    %4 = arith.mulf %2, %3 : vector<1x20xf32>
    %cst_1 = arith.constant 5.000000e+00 : f32
    %5 = vector.broadcast %cst_1 : f32 to vector<1x20xf32>
    %6 = arith.addf %4, %5 : vector<1x20xf32>
    %cst_2 = arith.constant dense<0xFF800000> : vector<8xf32>
    %7 = vector.multi_reduction <maximumf>, %0, %cst_2 [1] : vector<8x20xf32> to vector<8xf32>
    %8 = vector.shape_cast %7 : vector<8xf32> to vector<8x1xf32>
    %9 = vector.broadcast %8 : vector<8x1xf32> to vector<8x20xf32>
    %10 = arith.subf %0, %9 : vector<8x20xf32>
    %11 = math.exp %10 : vector<8x20xf32>
    %12 = vector.broadcast %6 : vector<1x20xf32> to vector<8x20xf32>
    %13 = arith.mulf %11, %12 : vector<8x20xf32>
    %cst_3 = arith.constant dense<0.000000e+00> : vector<8xf32>
    %14 = vector.multi_reduction <add>, %13, %cst_3 [1] : vector<8x20xf32> to vector<8xf32>
    %15 = vector.shape_cast %14 : vector<8xf32> to vector<8x1xf32>
    %cst_4 = arith.constant dense<0.000000e+00> : vector<8xf32>
    %16 = vector.multi_reduction <add>, %11, %cst_4 [1] : vector<8x20xf32> to vector<8xf32>
    %17 = vector.shape_cast %16 : vector<8xf32> to vector<8x1xf32>
    %18 = tpu.reciprocal %17 {approx = true} : vector<8x1xf32> -> vector<8x1xf32>
    %19 = arith.mulf %15, %18 : vector<8x1xf32>
    %c0_5 = arith.constant 0 : index
    %c0_6 = arith.constant 0 : index
    %20 = vector.load %arg1[%c0_5, %c0_6] : memref<8x1xf32, #tpu.memory_space<vmem>>, vector<8x1xf32>
    %21 = arith.subf %19, %20 : vector<8x1xf32>
    %22 = arith.mulf %21, %21 : vector<8x1xf32>
    %23 = vector.shape_cast %22 : vector<8x1xf32> to vector<1x8x1xf32>
    %cst_7 = arith.constant dense<0.000000e+00> : vector<1xf32>
    %24 = vector.multi_reduction <add>, %23, %cst_7 [1, 2] : vector<1x8x1xf32> to vector<1xf32>
    %25 = vector.shape_cast %24 : vector<1xf32> to vector<1x1x1xf32>
    %26 = vector.extract %25[0, 0, 0] : f32 from vector<1x1x1xf32>
    %27 = vector.broadcast %26 : f32 to vector<1x1xf32>
    %cst_8 = arith.constant 1.250000e-01 : f32
    %28 = vector.broadcast %cst_8 : f32 to vector<1x1xf32>
    %29 = arith.mulf %27, %28 : vector<1x1xf32>
    %c0_9 = arith.constant 0 : index
    %c0_10 = arith.constant 0 : index
    %30 = vector.load %arg2[%c0_9, %c0_10] : memref<1x1xf32, #tpu.memory_space<vmem>>, vector<1x1xf32>
    tpu.vector_store %arg2[%c0_9, %c0_10], %29 {strides = array<i32>} : memref<1x1xf32, #tpu.memory_space<vmem>>, vector<1x1xf32>,
    return
  }
}

</mosaic_0001>

<llo_original>
// kernel: mse_ce_scaled_averaging.1
$region0: #{mse_ce_scaled_averaging.1}
  #allocation0 [shape = 'u32[]', space=smem, size = 0x4, offset = 0x4, fixed_abs, tag = 'smem constant byte address 0x4 - core index']
  #allocation1 [shape = 'u32[144,128]{1,0:T(1,128)}', space=vmem, size = 0x12000, scoped, tag = 'internal scratch']
  %s0 = inlined_call_operand.vmem [shape: f32[8,20], index: 0, kind: input, shape index: {}]
  %s1 = inlined_call_operand.vmem [shape: f32[8,1], index: 1, kind: input, shape index: {}]
  %s2 = inlined_call_operand.hbm [shape: f32[1,1], index: 2, kind: output, shape index: {}]
  %s3 = sld [smem:[#allocation0]]
  $region18: #{mse_ce_scaled_averaging.1} parent=0
    _
  %s5 = ssub.s32 1, %s3
  %s6 = scalar_select 0, %s5, %s3
  $region1: #{mse_ce_scaled_averaging.1} parent=0
    #allocation2 [shape = 'u8[512]{0}', space=vmem, size = 0x400, scoped, tag = 'output window, operand 0, single buffered']
    #allocation3 [shape = 's32[1]{0}', space=sflag, size = 0x4, scoped, tag = 'scoped memory for mse_ce_scaled_averaging.1']
    %7 = vsyncpa [#allocation3], 0
    // Predicated region
    $region2: #{mse_ce_scaled_averaging.1} parent=1 // pred_check
      _
    $region3: #{mse_ce_scaled_averaging.1} parent=1 // pred_check_branch
      %9 = sbr.rel (0) target = $region5
    $region4: #{mse_ce_scaled_averaging.1} parent=1 // pred_region
      _
    $region5: #{mse_ce_scaled_averaging.1} parent=1 // pred_fallthru
      _
    // Predicated region
    $region6: #{mse_ce_scaled_averaging.1} parent=1 // pred_check
      _
    $region7: #{mse_ce_scaled_averaging.1} parent=1 // pred_check_branch
      %11 = sbr.rel (0) target = $region9
    $region8: #{mse_ce_scaled_averaging.1} parent=1 // pred_region
      _
    $region9: #{mse_ce_scaled_averaging.1} parent=1 // pred_fallthru
      _
    %v12 = vld [vmem:[%s0] sm:$0xff]
    %v13 = vlaneseq
    %v14 = vand.u32 %v13, 127
    %v15 = vcvt.s32.f32 %v14
    %v16 = vmul.f32 %v15, 5.0
    %v17 = vadd.f32 %v16, 5.0
    %vm18 = vcmask 162816
    %v19 = vsel %vm18, %v12, -inf
    %20 = vmax.xlane.f32.xlu0 %v19
    %v21 = vpop.xlane.xlu0 %20
    %v22 = vsub.f32 %v12, %v21
    %v23 = vmul.f32 %v22, 1.442695
    %v24 = vpow.pop %v23
    %v25 = vmul.f32 %v24, %v17
    %v26 = vsel %vm18, %v25, 0.0
    %27 = vadd.xlane.f32.xlu0 %v26
    %v28 = vpop.xlane.xlu0 %27
    %v29 = vsel %vm18, %v24, 0.0
    %30 = vadd.xlane.f32.xlu0 %v29
    %v31 = vpop.xlane.xlu0 %30
    %v32 = vrcp.pop %v31
    %v33 = vmul.f32 %v28, %v32
    %v34 = vld [vmem:[%s1] sm:$0xff]
    %v35 = vsub.f32 %v33, %v34
    %v36 = vmul.f32 %v35, %v35
    %vm37 = vcmask 7168
    %v38 = vsel %vm37, %v36, 0.0
    %39 = vadd.xlane.f32.xlu0 %v38
    %v40 = vpop.xlane.xlu0 %39
    %v41 = vrot.slane %v40, 4
    %v42 = vadd.f32 %v40, %v41
    %v43 = vrot.slane %v42, 2
    %v44 = vadd.f32 %v42, %v43
    %v45 = vrot.slane %v44, 1
    %v46 = vadd.f32 %v44, %v45
    %s47 = vtos %v46
    %v48 = vstv %s47
    %v49 = vmul.f32 %v48, 0.125
    %vm50 = vcmask 0
    %51 = vst.msk [vmem:[#allocation2] sm:$0x1] %vm50, %v49
    // Predicated region
    $region10: #{mse_ce_scaled_averaging.1} parent=1 // pred_check
      _
    $region11: #{mse_ce_scaled_averaging.1} parent=1 // pred_check_branch
      %53 = sbr.rel (0) target = $region13
    $region12: #{mse_ce_scaled_averaging.1} parent=1 // pred_region
      %s55 = ssub.s32 16, 16
      %56 = vsyncadd [#allocation3], %s55
      %s58 = sshll.u32 [#allocation2], 4
      %s59 = int_to_ptr.vmem [resolvable:$true] %s58
      %61 = dma.vmem_to_hbm [thread:$0]  %s59, 16, %s2, [#allocation3]
    $region13: #{mse_ce_scaled_averaging.1} parent=1 // pred_fallthru
      _
    // Predicated region
    $region14: #{mse_ce_scaled_averaging.1} parent=1 // pred_check
      _
    $region15: #{mse_ce_scaled_averaging.1} parent=1 // pred_check_branch
      %63 = sbr.rel (0) target = $region17
    $region16: #{mse_ce_scaled_averaging.1} parent=1 // pred_region
      %64 = dma.done [#allocation3], 16
    $region17: #{mse_ce_scaled_averaging.1} parent=1 // pred_fallthru
      _
    %65 = vsyncpa [#allocation3], 1

</llo_original>
